<compile_context>
chip_gen: v5e
topology: v5e:2x2
jax: 0.10.0
libtpu: 0.0.40
codegen_flags: <defaults>
</compile_context>

<pallas_src>
import jax
import jax.numpy as jnp
from jax.experimental import pallas as pl
from jax.experimental.pallas import tpu as pltpu


def cross_layer_kernel(x0_ref, x_ref, wb_ref, out_ref):
    x0 = x0_ref[...]                                   # (tb, D)
    x = x_ref[...]                                     # (tb, D)
    w = wb_ref[0, :][None, :]                          # (1, D)
    b = wb_ref[1, :][None, :]                          # (1, D)

    # trans = x . w  -> one cross-lane reduction per row (XLU); MXU not needed.
    trans = jnp.sum(x * w, axis=-1, keepdims=True)     # (tb, 1)

    # out = x0 * trans + b + x  (single fused VPU expression, lane-dense store)
    out_ref[...] = x0 * trans + b + x


def cross_layer_pallas(x0, x, w, b, *, tb=128, target_grid_steps=4):
    """x0, x: (B, D) float32; w, b: (D,) float32.  Returns (B, D) float32."""
    B, D = x.shape
    assert x0.shape == (B, D) and w.shape == (D,) and b.shape == (D,)

    x0 = x0.astype(jnp.float32)
    x = x.astype(jnp.float32)
    wb = jnp.stack([w, b], axis=0).astype(jnp.float32)          # (2, D) consolidated

    # --- tile sizing (perf feedback): tb <= 128 to avoid vreg spills, and aim
    # for >= target_grid_steps parallel grid steps so v7x megacore is fed.
    def round_up(v, m):
        return ((v + m - 1) // m) * m

    tb = min(tb, round_up(pl.cdiv(B, target_grid_steps), 8))
    tb = max(8, (tb // 8) * 8)

    pad = (-B) % tb
    if pad:
        x0 = jnp.pad(x0, ((0, pad), (0, 0)))
        x = jnp.pad(x, ((0, pad), (0, 0)))
    bp = B + pad
    grid = (bp // tb,)

    grid_spec = pltpu.PrefetchScalarGridSpec(
        num_scalar_prefetch=0,
        grid=grid,
        in_specs=[
            pl.BlockSpec((tb, D), lambda i: (i, 0)),            # x0
            pl.BlockSpec((tb, D), lambda i: (i, 0)),            # x
            pl.BlockSpec((2, D), lambda i: (0, 0)),             # stacked [w; b]
        ],
        out_specs=pl.BlockSpec((tb, D), lambda i: (i, 0)),      # lane-dense output
    )

    out = pl.pallas_call(
        cross_layer_kernel,
        out_shape=jax.ShapeDtypeStruct((bp, D), jnp.float32),
        grid_spec=grid_spec,
        compiler_params=pltpu.CompilerParams(
            dimension_semantics=("parallel",)),
    )(x0, x, wb)

    return out[:B] if pad else out


def reference_forward(x0, x, w, b):
    """Pure-JAX mirror of cross_layer.forward (PyTorch einsum semantics)."""
    trans = jnp.sum(x * w[None, :], axis=-1, keepdims=True)     # 'bi,i->b'
    return x0 * trans + b[None, :] + x                          # 'bi,b->bi' + b + x


if __name__ == "__main__":
    # Small shapes consistent with the module: input_dim=128 (TPU lane width),
    # batch=512 -> grid of 4 parallel tiles of 128 rows each.
    B, D = 512, 128
    key = jax.random.PRNGKey(0)
    k0, k1, kw, kb = jax.random.split(key, 4)
    x0 = jax.random.normal(k0, (B, D), jnp.float32)
    x = jax.random.normal(k1, (B, D), jnp.float32)
    # nn.init.uniform_(p, 0.2, 1) for both parameters
    w = jax.random.uniform(kw, (D,), jnp.float32, 0.2, 1.0)
    b = jax.random.uniform(kb, (D,), jnp.float32, 0.2, 1.0)

    out = cross_layer_pallas(x0, x, w, b)
    out = jax.block_until_ready(out)

    ref = reference_forward(x0, x, w, b)
    assert out.shape == (B, D)
    assert jnp.allclose(out, ref, atol=1e-4, rtol=1e-4)
    print("KERNEL_OK")
</pallas_src>

<mosaic_0001>
module attributes {stable_mosaic.version = 11 : i64} {
  func.func @cross_layer_kernel(%arg0: i32, %arg1: memref<128x128xf32, #tpu.memory_space<vmem>>, %arg2: memref<128x128xf32, #tpu.memory_space<vmem>>, %arg3: memref<2x128xf32, #tpu.memory_space<vmem>>, %arg4: memref<128x128xf32, #tpu.memory_space<vmem>>) attributes {dimension_semantics = [#tpu.dimension_semantics<parallel>], iteration_bounds = array<i64: 4>, scalar_prefetch = 0 : i64, scratch_operands = 0 : i64, tpu.core_type = #tpu.core_type<tc>, window_params = [{transform_indices = @transform_0, window_bounds = array<i64: 128, 128>}, {transform_indices = @transform_1, window_bounds = array<i64: 128, 128>}, {pipeline_mode = #tpu.pipeline_mode<synchronous>, transform_indices = @transform_2, window_bounds = array<i64: 2, 128>}, {transform_indices = @transform_3, window_bounds = array<i64: 128, 128>}]} {
    %c0 = arith.constant 0 : index
    %c0_0 = arith.constant 0 : index
    %0 = vector.load %arg1[%c0, %c0_0] : memref<128x128xf32, #tpu.memory_space<vmem>>, vector<128x128xf32>
    %c0_1 = arith.constant 0 : index
    %c0_2 = arith.constant 0 : index
    %1 = vector.load %arg2[%c0_1, %c0_2] : memref<128x128xf32, #tpu.memory_space<vmem>>, vector<128x128xf32>
    %c0_3 = arith.constant 0 : index
    %c0_4 = arith.constant 0 : index
    %2 = vector.load %arg3[%c0_3, %c0_4] : memref<2x128xf32, #tpu.memory_space<vmem>>, vector<1x128xf32>
    %3 = vector.shape_cast %2 : vector<1x128xf32> to vector<128xf32>
    %4 = vector.shape_cast %3 : vector<128xf32> to vector<1x128xf32>
    %c1 = arith.constant 1 : index
    %c0_5 = arith.constant 0 : index
    %5 = vector.load %arg3[%c1, %c0_5] : memref<2x128xf32, #tpu.memory_space<vmem>>, vector<1x128xf32>
    %6 = vector.shape_cast %5 : vector<1x128xf32> to vector<128xf32>
    %7 = vector.shape_cast %6 : vector<128xf32> to vector<1x128xf32>
    %8 = vector.broadcast %4 : vector<1x128xf32> to vector<128x128xf32>
    %9 = arith.mulf %1, %8 : vector<128x128xf32>
    %cst = arith.constant dense<0.000000e+00> : vector<128xf32>
    %10 = vector.multi_reduction <add>, %9, %cst [1] : vector<128x128xf32> to vector<128xf32>
    %11 = vector.shape_cast %10 : vector<128xf32> to vector<128x1xf32>
    %12 = vector.broadcast %11 : vector<128x1xf32> to vector<128x128xf32>
    %13 = arith.mulf %0, %12 : vector<128x128xf32>
    %14 = vector.broadcast %7 : vector<1x128xf32> to vector<128x128xf32>
    %15 = arith.addf %13, %14 : vector<128x128xf32>
    %16 = arith.addf %15, %1 : vector<128x128xf32>
    %c0_6 = arith.constant 0 : index
    %c0_7 = arith.constant 0 : index
    %17 = vector.load %arg4[%c0_6, %c0_7] : memref<128x128xf32, #tpu.memory_space<vmem>>, vector<128x128xf32>
    tpu.vector_store %arg4[%c0_6, %c0_7], %16 {strides = array<i32>} : memref<128x128xf32, #tpu.memory_space<vmem>>, vector<128x128xf32>,
    return
  }
  func.func @transform_0(%arg0: i32) -> (i32, i32) {
    %c0_i32 = arith.constant 0 : i32
    %c0_i32_0 = arith.constant 0 : i32
    return %arg0, %c0_i32 : i32, i32
  }
  func.func @transform_1(%arg0: i32) -> (i32, i32) {
    %c0_i32 = arith.constant 0 : i32
    %c0_i32_0 = arith.constant 0 : i32
    return %arg0, %c0_i32 : i32, i32
  }
  func.func @transform_2(%arg0: i32) -> (i32, i32) {
    %c0_i32 = arith.constant 0 : i32
    %c0_i32_0 = arith.constant 0 : i32
    %c0_i32_1 = arith.constant 0 : i32
    return %c0_i32, %c0_i32_0 : i32, i32
  }
  func.func @transform_3(%arg0: i32) -> (i32, i32) {
    %c0_i32 = arith.constant 0 : i32
    %c0_i32_0 = arith.constant 0 : i32
    return %arg0, %c0_i32 : i32, i32
  }
}

</mosaic_0001>

<llo_original>
// kernel: tpu_custom_call.1
$region0: #{tpu_custom_call.1}
  #allocation0 [shape = 'u32[]', space=smem, size = 0x4, offset = 0x4, fixed_abs, tag = 'smem constant byte address 0x4 - core index']
  #allocation1 [shape = 'u32[72,128]{1,0:T(1,128)}', space=vmem, size = 0x9000, scoped, tag = 'internal scratch']
  %s0 = inlined_call_operand.hbm [shape: f32[512,128], index: 0, kind: input, shape index: {}]
  %s1 = inlined_call_operand.hbm [shape: f32[512,128], index: 1, kind: input, shape index: {}]
  %s2 = inlined_call_operand.hbm [shape: f32[2,128], index: 2, kind: input, shape index: {}]
  %s3 = inlined_call_operand.hbm [shape: f32[512,128], index: 3, kind: output, shape index: {}]
  %s4 = sld [smem:[#allocation0]]
  $region57: #{tpu_custom_call.1} parent=0
    _
  %s6 = ssub.s32 1, %s4
  %s7 = scalar_select 0, %s6, %s4
  $region1: #{tpu_custom_call.1} parent=0
    #allocation2 [shape = 'u8[131072]{0}', space=vmem, size = 0x20000, scoped, tag = 'input window, operand 0']
    #allocation3 [shape = 's32[2]{0}', space=sflag, size = 0x8, scoped, tag = 'scoped memory for tpu_custom_call.1']
    #allocation4 [shape = 's32[2]{0}', space=sflag, size = 0x8, scoped, tag = 'scoped memory for tpu_custom_call.1']
    #allocation5 [shape = 'u8[131072]{0}', space=vmem, size = 0x20000, scoped, tag = 'input window, operand 1']
    #allocation6 [shape = 's32[2]{0}', space=sflag, size = 0x8, scoped, tag = 'scoped memory for tpu_custom_call.1']
    #allocation7 [shape = 'u8[1024]{0}', space=vmem, size = 0x400, scoped, tag = 'input window, operand 2, single buffered']
    #allocation8 [shape = 'u8[131072]{0}', space=vmem, size = 0x20000, scoped, tag = 'output window, operand 0']
    %8 = vsyncpa [#allocation3], 0
    %s9 = scalar_lea.sflag [#allocation3], 1
    %10 = vsyncpa %s9, 0
    %11 = vsyncpa [#allocation6], 0
    %s12 = scalar_lea.sflag [#allocation6], 1
    %13 = vsyncpa %s12, 0
    %14 = vsyncpa [#allocation4], 0
    %s15 = scalar_lea.sflag [#allocation4], 1
    %16 = vsyncpa %s15, 0
    loop: start=0, step=1, limit=6
    $region2: #{tpu_custom_call.1} parent=1 // loop_pre_header
      _
    $region3: #{tpu_custom_call.1} parent=1 // loop_header
      %s18 = sphi 0, %s22
      %p19 = scmp.ge.s32.totalorder %s18, 6
      %s28 = sphi 0, %s30
      %s31 = sphi 0, %s28
      %s32 = sphi 0, %s31
      %s48 = sphi 0, %s32
      %s54 = sphi 0, %s56
      %s57 = sphi 0, %s54
      %s58 = sphi 0, %s57
      %s74 = sphi 0, %s58
      %s78 = sphi 0, %s78
      %s80 = sphi 0, %s78
      %s81 = sphi 0, %s80
      %s95 = sphi 0, %s81
      %s101 = sphi 0, %s103
      %s104 = sphi 0, %s101
      %s105 = sphi 0, %s104
      %s121 = sphi 0, %s105
    $region4: #{tpu_custom_call.1} parent=1 // loop_header_branch
      %21 = sbr.rel (%p19) target = $region8
    $region5: #{tpu_custom_call.1} parent=1 // loop_body
      %s23 = ssub.s32 %s18, 1
      %s24 = ssub.s32 %s18, 2
      %s25 = sadd.s32 %s18, 1
      %s26 = ssub.s32 %s18, %s25
      %p27 = scmp.eq.s32.totalorder %s26, 0
      %s29 = sadd.s32 %s28, 1
      %s30 = scalar_select %p27, %s28, %s29
      %p33 = pneg %p27
      %p34 = scmp.eq.s32.totalorder %s18, 3
      %p35 = por %p33, %p34
      %p36 = scmp.ne.s32.totalorder %s28, %s31
      %p37 = scmp.eq.s32.totalorder %s18, 0
      %p38 = por %p36, %p37
      %p39 = scmp.ne.s32.totalorder %s28, %s31
      %p40 = scmp.eq.s32.totalorder %s23, 3
      %p41 = por %p39, %p40
      %p42 = scmp.ne.s32.totalorder %s31, %s32
      %p43 = scmp.eq.s32.totalorder %s23, 0
      %p44 = por %p42, %p43
      %p45 = scmp.ne.s32.totalorder %s31, %s32
      %p46 = scmp.eq.s32.totalorder %s24, 3
      %p47 = por %p45, %p46
      %p49 = scmp.ne.s32.totalorder %s32, %s48
      %p50 = scmp.eq.s32.totalorder %s24, 0
      %p51 = por %p49, %p50
      %s52 = ssub.s32 %s18, %s25
      %p53 = scmp.eq.s32.totalorder %s52, 0
      %s55 = sadd.s32 %s54, 1
      %s56 = scalar_select %p53, %s54, %s55
      %p59 = pneg %p53
      %p60 = scmp.eq.s32.totalorder %s18, 3
      %p61 = por %p59, %p60
      %p62 = scmp.ne.s32.totalorder %s54, %s57
      %p63 = scmp.eq.s32.totalorder %s18, 0
      %p64 = por %p62, %p63
      %p65 = scmp.ne.s32.totalorder %s54, %s57
      %p66 = scmp.eq.s32.totalorder %s23, 3
      %p67 = por %p65, %p66
      %p68 = scmp.ne.s32.totalorder %s57, %s58
      %p69 = scmp.eq.s32.totalorder %s23, 0
      %p70 = por %p68, %p69
      %p71 = scmp.ne.s32.totalorder %s57, %s58
      %p72 = scmp.eq.s32.totalorder %s24, 3
      %p73 = por %p71, %p72
      %p75 = scmp.ne.s32.totalorder %s58, %s74
      %p76 = scmp.eq.s32.totalorder %s24, 0
      %p77 = por %p75, %p76
      %s79 = sadd.s32 %s78, 1
      %p82 = scmp.eq.s32.totalorder %s18, 3
      %p83 = scmp.ne.s32.totalorder %s78, %s80
      %p84 = scmp.eq.s32.totalorder %s18, 0
      %p85 = por %p83, %p84
      %p86 = scmp.ne.s32.totalorder %s78, %s80
      %p87 = scmp.eq.s32.totalorder %s23, 3
      %p88 = por %p86, %p87
      %p89 = scmp.ne.s32.totalorder %s80, %s81
      %p90 = scmp.eq.s32.totalorder %s23, 0
      %p91 = por %p89, %p90
      %p92 = scmp.ne.s32.totalorder %s80, %s81
      %p93 = scmp.eq.s32.totalorder %s24, 3
      %p94 = por %p92, %p93
      %p96 = scmp.ne.s32.totalorder %s81, %s95
      %p97 = scmp.eq.s32.totalorder %s24, 0
      %p98 = por %p96, %p97
      %s99 = ssub.s32 %s18, %s25
      %p100 = scmp.eq.s32.totalorder %s99, 0
      %s102 = sadd.s32 %s101, 1
      %s103 = scalar_select %p100, %s101, %s102
      %p106 = pneg %p100
      %p107 = scmp.eq.s32.totalorder %s18, 3
      %p108 = por %p106, %p107
      %p109 = scmp.ne.s32.totalorder %s101, %s104
      %p110 = scmp.eq.s32.totalorder %s18, 0
      %p111 = por %p109, %p110
      %p112 = scmp.ne.s32.totalorder %s101, %s104
      %p113 = scmp.eq.s32.totalorder %s23, 3
      %p114 = por %p112, %p113
      %p115 = scmp.ne.s32.totalorder %s104, %s105
      %p116 = scmp.eq.s32.totalorder %s23, 0
      %p117 = por %p115, %p116
      %p118 = scmp.ne.s32.totalorder %s104, %s105
      %p119 = scmp.eq.s32.totalorder %s24, 3
      %p120 = por %p118, %p119
      %p122 = scmp.ne.s32.totalorder %s105, %s121
      %p123 = scmp.eq.s32.totalorder %s24, 0
      %p124 = por %p122, %p123
      %p125 = scmp.le.s32.totalorder 1, %s18
      %p126 = scmp.lt.s32.totalorder %s18, 5
      %p127 = pnand %p125, %p126
      %p128 = pneg %p127
      // Predicated region
      $region9: #{tpu_custom_call.1} parent=5 // pred_check
        _
      $region10: #{tpu_custom_call.1} parent=5 // pred_check_branch
        %130 = sbr.rel (%p127) target = $region12
      $region11: #{tpu_custom_call.1} parent=5 // pred_region
        %s131 = ssub.s32 %s18, 1
        // Predicated region
        $region13: #{tpu_custom_call.1} parent=11 // pred_check
          %p132 = pneg %p91
        $region14: #{tpu_custom_call.1} parent=11 // pred_check_branch
          %134 = sbr.rel (%p132) target = $region16
        $region15: #{tpu_custom_call.1} parent=11 // pred_region
          %136 = vsyncadd [#allocation6], 0
          %s138 = sshll.u32 %s2, 4
          %s139 = int_to_ptr.hbm [resolvable:$true] %s138
          %s140 = sshll.u32 [#allocation7], 4
          %s141 = int_to_ptr.vmem [resolvable:$true] %s140
          %143 = dma.hbm_to_vmem [thread:$0]  %s139, 32, %s141, [#allocation6]
        $region16: #{tpu_custom_call.1} parent=11 // pred_fallthru
          _
      $region12: #{tpu_custom_call.1} parent=5 // pred_fallthru
        _
      %p144 = scmp.lt.s32.totalorder %s18, 4
      // Predicated region
      $region17: #{tpu_custom_call.1} parent=5 // pred_check
        %p145 = pneg %p144
      $region18: #{tpu_custom_call.1} parent=5 // pred_check_branch
        %147 = sbr.rel (%p145) target = $region20
      $region19: #{tpu_custom_call.1} parent=5 // pred_region
        // Predicated region
        $region21: #{tpu_custom_call.1} parent=19 // pred_check
          %p148 = pneg %p38
        $region22: #{tpu_custom_call.1} parent=19 // pred_check_branch
          %150 = sbr.rel (%p148) target = $region24
        $region23: #{tpu_custom_call.1} parent=19 // pred_region
          %s151 = sand.u32 %s28, 1
          %s152 = scalar_lea.sflag [#allocation3], %s151
          %s153 = sand.u32 %s28, 1
          %s154 = smul.addr %s153, 128
          %s155 = scalar_lea.vmem [#allocation2], %s154
          %s156 = smul.u32 16, %s18
          %158 = vsyncadd %s152, 0
          %s159 = smul.addr %s156, 8
          %s160 = scalar_lea.hbm %s0, %s159
          %s161 = sshll.u32 %s160, 4
          %s162 = int_to_ptr.hbm [resolvable:$true] %s161
          %s163 = sshll.u32 %s155, 4
          %s164 = int_to_ptr.vmem [resolvable:$true] %s163
          %169 = dma.hbm_to_vmem [thread:$0]  %s162, 2048, %s164, %s152, 128, 128, 8
        $region24: #{tpu_custom_call.1} parent=19 // pred_fallthru
          _
        // Predicated region
        $region25: #{tpu_custom_call.1} parent=19 // pred_check
          %p170 = pneg %p64
        $region26: #{tpu_custom_call.1} parent=19 // pred_check_branch
          %172 = sbr.rel (%p170) target = $region28
        $region27: #{tpu_custom_call.1} parent=19 // pred_region
          %s173 = sand.u32 %s18, 1
          %s174 = scalar_lea.sflag [#allocation6], %s173
          %s175 = sand.u32 %s54, 1
          %s176 = smul.addr %s175, 128
          %s177 = scalar_lea.vmem [#allocation5], %s176
          %s178 = smul.u32 16, %s18
          %180 = vsyncadd %s174, 0
          %s181 = smul.addr %s178, 8
          %s182 = scalar_lea.hbm %s1, %s181
          %s183 = sshll.u32 %s182, 4
          %s184 = int_to_ptr.hbm [resolvable:$true] %s183
          %s185 = sshll.u32 %s177, 4
          %s186 = int_to_ptr.vmem [resolvable:$true] %s185
          %191 = dma.hbm_to_vmem [thread:$0]  %s184, 2048, %s186, %s174, 128, 128, 8
        $region28: #{tpu_custom_call.1} parent=19 // pred_fallthru
          _
      $region20: #{tpu_custom_call.1} parent=5 // pred_fallthru
        _
      %p192 = scmp.le.s32.totalorder 1, %s18
      %p193 = scmp.lt.s32.totalorder %s18, 5
      %p194 = pnand %p192, %p193
      %p195 = pneg %p194
      // Predicated region
      $region29: #{tpu_custom_call.1} parent=5 // pred_check
        _
      $region30: #{tpu_custom_call.1} parent=5 // pred_check_branch
        %197 = sbr.rel (%p194) target = $region32
      $region31: #{tpu_custom_call.1} parent=5 // pred_region
        %s198 = ssub.s32 %s18, 1
        %s199 = sand.u32 %s31, 1
        %s200 = scalar_lea.sflag [#allocation3], %s199
        %s201 = sand.u32 %s31, 1
        %s202 = smul.addr %s201, 128
        %s203 = scalar_lea.vmem [#allocation2], %s202
        // Predicated region
        $region33: #{tpu_custom_call.1} parent=31 // pred_check
          %p204 = pneg %p44
        $region34: #{tpu_custom_call.1} parent=31 // pred_check_branch
          %206 = sbr.rel (%p204) target = $region36
        $region35: #{tpu_custom_call.1} parent=31 // pred_region
          %208 = dma.done %s200, 2048
        $region36: #{tpu_custom_call.1} parent=31 // pred_fallthru
          _
        %s209 = sand.u32 %s23, 1
        %s210 = scalar_lea.sflag [#allocation6], %s209
        %s211 = sand.u32 %s57, 1
        %s212 = smul.addr %s211, 128
        %s213 = scalar_lea.vmem [#allocation5], %s212
        // Predicated region
        $region37: #{tpu_custom_call.1} parent=31 // pred_check
          %p214 = pneg %p70
        $region38: #{tpu_custom_call.1} parent=31 // pred_check_branch
          %216 = sbr.rel (%p214) target = $region40
        $region39: #{tpu_custom_call.1} parent=31 // pred_region
          %218 = dma.done %s210, 2048
        $region40: #{tpu_custom_call.1} parent=31 // pred_fallthru
          _
        // Predicated region
        $region41: #{tpu_custom_call.1} parent=31 // pred_check
          %p219 = pneg %p91
        $region42: #{tpu_custom_call.1} parent=31 // pred_check_branch
          %221 = sbr.rel (%p219) target = $region44
        $region43: #{tpu_custom_call.1} parent=31 // pred_region
          %223 = dma.done [#allocation6], 32
        $region44: #{tpu_custom_call.1} parent=31 // pred_fallthru
          _
        %s224 = sand.u32 %s31, 1
        %s225 = scalar_lea.sflag [#allocation3], %s224
        %s226 = sand.u32 %s31, 1
        %s227 = smul.addr %s226, 128
        %s228 = scalar_lea.vmem [#allocation2], %s227
        %p229 = pneg %p44
        %p230 = pneg %p41
        %s231 = sand.u32 %s23, 1
        %s232 = scalar_lea.sflag [#allocation6], %s231
        %s233 = sand.u32 %s57, 1
        %s234 = smul.addr %s233, 128
        %s235 = scalar_lea.vmem [#allocation5], %s234
        %p236 = pneg %p70
        %p237 = pneg %p67
        %p238 = pneg %p91
        %p239 = pneg %p88
        %p240 = pneg %p117
        %p241 = pneg %p114
        %s242 = sand.u32 %s104, 1
        %s243 = scalar_lea.sflag [#allocation4], %s242
        %s244 = sand.u32 %s104, 1
        %s245 = smul.addr %s244, 128
        %s246 = scalar_lea.vmem [#allocation8], %s245
        %s247 = smul.u32 16, %s23
        %s248 = smul.u32 16, %s23
        %s249 = smul.u32 16, %s23
        %v250 = vld [vmem:[%s203] sm:$0xff]
        %v251 = vld [vmem:[%s203 + $0x8] sm:$0xff]
        %v252 = vld [vmem:[%s203 + $0x10] sm:$0xff]
        %v253 = vld [vmem:[%s203 + $0x18] sm:$0xff]
        %v254 = vld [vmem:[%s203 + $0x20] sm:$0xff]
        %v255 = vld [vmem:[%s203 + $0x28] sm:$0xff]
        %v256 = vld [vmem:[%s203 + $0x30] sm:$0xff]
        %v257 = vld [vmem:[%s203 + $0x38] sm:$0xff]
        %v258 = vld [vmem:[%s203 + $0x40] sm:$0xff]
        %v259 = vld [vmem:[%s203 + $0x48] sm:$0xff]
        %v260 = vld [vmem:[%s203 + $0x50] sm:$0xff]
        %v261 = vld [vmem:[%s203 + $0x58] sm:$0xff]
        %v262 = vld [vmem:[%s203 + $0x60] sm:$0xff]
        %v263 = vld [vmem:[%s203 + $0x68] sm:$0xff]
        %v264 = vld [vmem:[%s203 + $0x70] sm:$0xff]
        %v265 = vld [vmem:[%s203 + $0x78] sm:$0xff]
        %v266 = vld [vmem:[%s213] sm:$0xff]
        %v267 = vld [vmem:[%s213 + $0x8] sm:$0xff]
        %v268 = vld [vmem:[%s213 + $0x10] sm:$0xff]
        %v269 = vld [vmem:[%s213 + $0x18] sm:$0xff]
        %v270 = vld [vmem:[%s213 + $0x20] sm:$0xff]
        %v271 = vld [vmem:[%s213 + $0x28] sm:$0xff]
        %v272 = vld [vmem:[%s213 + $0x30] sm:$0xff]
        %v273 = vld [vmem:[%s213 + $0x38] sm:$0xff]
        %v274 = vld [vmem:[%s213 + $0x40] sm:$0xff]
        %v275 = vld [vmem:[%s213 + $0x48] sm:$0xff]
        %v276 = vld [vmem:[%s213 + $0x50] sm:$0xff]
        %v277 = vld [vmem:[%s213 + $0x58] sm:$0xff]
        %v278 = vld [vmem:[%s213 + $0x60] sm:$0xff]
        %v279 = vld [vmem:[%s213 + $0x68] sm:$0xff]
        %v280 = vld [vmem:[%s213 + $0x70] sm:$0xff]
        %v281 = vld [vmem:[%s213 + $0x78] sm:$0xff]
        %v282 = vld [vmem:[#allocation7] sm:$0x1]
        %v283 = vld [vmem:[#allocation7 + $0x1] sm:$0x1]
        %v284 = vperm.slane %v282, 0
        %v285 = vmul.f32 %v266, %v284
        %v286 = vmul.f32 %v267, %v284
        %v287 = vmul.f32 %v268, %v284
        %v288 = vmul.f32 %v269, %v284
        %v289 = vmul.f32 %v270, %v284
        %v290 = vmul.f32 %v271, %v284
        %v291 = vmul.f32 %v272, %v284
        %v292 = vmul.f32 %v273, %v284
        %v293 = vmul.f32 %v274, %v284
        %v294 = vmul.f32 %v275, %v284
        %v295 = vmul.f32 %v276, %v284
        %v296 = vmul.f32 %v277, %v284
        %v297 = vmul.f32 %v278, %v284
        %v298 = vmul.f32 %v279, %v284
        %v299 = vmul.f32 %v280, %v284
        %v300 = vmul.f32 %v281, %v284
        %301 = vadd.xlane.f32.xlu0 %v285
        %v302 = vpop.xlane.xlu0 %301
        %303 = vadd.xlane.f32.xlu0 %v286
        %v304 = vpop.xlane.xlu0 %303
        %305 = vadd.xlane.f32.xlu0 %v287
        %v306 = vpop.xlane.xlu0 %305
        %307 = vadd.xlane.f32.xlu0 %v288
        %v308 = vpop.xlane.xlu0 %307
        %309 = vadd.xlane.f32.xlu0 %v289
        %v310 = vpop.xlane.xlu0 %309
        %311 = vadd.xlane.f32.xlu0 %v290
        %v312 = vpop.xlane.xlu0 %311
        %313 = vadd.xlane.f32.xlu0 %v291
        %v314 = vpop.xlane.xlu0 %313
        %315 = vadd.xlane.f32.xlu0 %v292
        %v316 = vpop.xlane.xlu0 %315
        %317 = vadd.xlane.f32.xlu0 %v293
        %v318 = vpop.xlane.xlu0 %317
        %319 = vadd.xlane.f32.xlu0 %v294
        %v320 = vpop.xlane.xlu0 %319
        %321 = vadd.xlane.f32.xlu0 %v295
        %v322 = vpop.xlane.xlu0 %321
        %323 = vadd.xlane.f32.xlu0 %v296
        %v324 = vpop.xlane.xlu0 %323
        %325 = vadd.xlane.f32.xlu0 %v297
        %v326 = vpop.xlane.xlu0 %325
        %327 = vadd.xlane.f32.xlu0 %v298
        %v328 = vpop.xlane.xlu0 %327
        %329 = vadd.xlane.f32.xlu0 %v299
        %v330 = vpop.xlane.xlu0 %329
        %331 = vadd.xlane.f32.xlu0 %v300
        %v332 = vpop.xlane.xlu0 %331
        %v333 = vmul.f32 %v250, %v302
        %v334 = vmul.f32 %v251, %v304
        %v335 = vmul.f32 %v252, %v306
        %v336 = vmul.f32 %v253, %v308
        %v337 = vmul.f32 %v254, %v310
        %v338 = vmul.f32 %v255, %v312
        %v339 = vmul.f32 %v256, %v314
        %v340 = vmul.f32 %v257, %v316
        %v341 = vmul.f32 %v258, %v318
        %v342 = vmul.f32 %v259, %v320
        %v343 = vmul.f32 %v260, %v322
        %v344 = vmul.f32 %v261, %v324
        %v345 = vmul.f32 %v262, %v326
        %v346 = vmul.f32 %v263, %v328
        %v347 = vmul.f32 %v264, %v330
        %v348 = vmul.f32 %v265, %v332
        %v349 = vperm.slane %v283, 0
        %v350 = vadd.f32 %v333, %v349
        %v351 = vadd.f32 %v334, %v349
        %v352 = vadd.f32 %v335, %v349
        %v353 = vadd.f32 %v336, %v349
        %v354 = vadd.f32 %v337, %v349
        %v355 = vadd.f32 %v338, %v349
        %v356 = vadd.f32 %v339, %v349
        %v357 = vadd.f32 %v340, %v349
        %v358 = vadd.f32 %v341, %v349
        %v359 = vadd.f32 %v342, %v349
        %v360 = vadd.f32 %v343, %v349
        %v361 = vadd.f32 %v344, %v349
        %v362 = vadd.f32 %v345, %v349
        %v363 = vadd.f32 %v346, %v349
        %v364 = vadd.f32 %v347, %v349
        %v365 = vadd.f32 %v348, %v349
        %v366 = vadd.f32 %v350, %v266
        %v367 = vadd.f32 %v351, %v267
        %v368 = vadd.f32 %v352, %v268
        %v369 = vadd.f32 %v353, %v269
        %v370 = vadd.f32 %v354, %v270
        %v371 = vadd.f32 %v355, %v271
        %v372 = vadd.f32 %v356, %v272
        %v373 = vadd.f32 %v357, %v273
        %v374 = vadd.f32 %v358, %v274
        %v375 = vadd.f32 %v359, %v275
        %v376 = vadd.f32 %v360, %v276
        %v377 = vadd.f32 %v361, %v277
        %v378 = vadd.f32 %v362, %v278
        %v379 = vadd.f32 %v363, %v279
        %v380 = vadd.f32 %v364, %v280
        %v381 = vadd.f32 %v365, %v281
        %382 = vst [vmem:[%s246] sm:$0xff] %v366
        %383 = vst [vmem:[%s246 + $0x8] sm:$0xff] %v367
        %384 = vst [vmem:[%s246 + $0x10] sm:$0xff] %v368
        %385 = vst [vmem:[%s246 + $0x18] sm:$0xff] %v369
        %386 = vst [vmem:[%s246 + $0x20] sm:$0xff] %v370
        %387 = vst [vmem:[%s246 + $0x28] sm:$0xff] %v371
        %388 = vst [vmem:[%s246 + $0x30] sm:$0xff] %v372
        %389 = vst [vmem:[%s246 + $0x38] sm:$0xff] %v373
        %390 = vst [vmem:[%s246 + $0x40] sm:$0xff] %v374
        %391 = vst [vmem:[%s246 + $0x48] sm:$0xff] %v375
        %392 = vst [vmem:[%s246 + $0x50] sm:$0xff] %v376
        %393 = vst [vmem:[%s246 + $0x58] sm:$0xff] %v377
        %394 = vst [vmem:[%s246 + $0x60] sm:$0xff] %v378
        %395 = vst [vmem:[%s246 + $0x68] sm:$0xff] %v379
        %396 = vst [vmem:[%s246 + $0x70] sm:$0xff] %v380
        %397 = vst [vmem:[%s246 + $0x78] sm:$0xff] %v381
        %s398 = sand.u32 %s104, 1
        %s399 = scalar_lea.sflag [#allocation4], %s398
        %s400 = sand.u32 %s104, 1
        %s401 = smul.addr %s400, 128
        %s402 = scalar_lea.vmem [#allocation8], %s401
        // Predicated region
        $region45: #{tpu_custom_call.1} parent=31 // pred_check
          %p403 = pneg %p114
        $region46: #{tpu_custom_call.1} parent=31 // pred_check_branch
          %405 = sbr.rel (%p403) target = $region48
        $region47: #{tpu_custom_call.1} parent=31 // pred_region
          %s406 = smul.u32 16, %s23
          %408 = vsyncadd %s399, 0
          %s409 = smul.addr %s406, 8
          %s410 = scalar_lea.hbm %s3, %s409
          %s411 = sshll.u32 %s402, 4
          %s412 = int_to_ptr.vmem [resolvable:$true] %s411
          %s413 = sshll.u32 %s410, 4
          %s414 = int_to_ptr.hbm [resolvable:$true] %s413
          %419 = dma.vmem_to_hbm [thread:$0]  %s412, 2048, %s414, %s399, 128, 128, 8
        $region48: #{tpu_custom_call.1} parent=31 // pred_fallthru
          _
      $region32: #{tpu_custom_call.1} parent=5 // pred_fallthru
        _
      %p420 = scmp.le.s32.totalorder 2, %s18
      // Predicated region
      $region49: #{tpu_custom_call.1} parent=5 // pred_check
        %p421 = pneg %p420
      $region50: #{tpu_custom_call.1} parent=5 // pred_check_branch
        %423 = sbr.rel (%p421) target = $region52
      $region51: #{tpu_custom_call.1} parent=5 // pred_region
        %s424 = ssub.s32 %s18, 2
        // Predicated region
        $region53: #{tpu_custom_call.1} parent=51 // pred_check
          %p425 = pneg %p120
        $region54: #{tpu_custom_call.1} parent=51 // pred_check_branch
          %427 = sbr.rel (%p425) target = $region56
        $region55: #{tpu_custom_call.1} parent=51 // pred_region
          %s428 = sand.u32 %s105, 1
          %s429 = scalar_lea.sflag [#allocation4], %s428
          %s430 = sand.u32 %s105, 1
          %s431 = smul.addr %s430, 128
          %s432 = scalar_lea.vmem [#allocation8], %s431
          %434 = dma.done %s429, 2048
        $region56: #{tpu_custom_call.1} parent=51 // pred_fallthru
          _
      $region52: #{tpu_custom_call.1} parent=5 // pred_fallthru
        _
    $region6: #{tpu_custom_call.1} parent=1 // loop_footer
      %s22 = sadd.s32 1, %s18
    $region7: #{tpu_custom_call.1} parent=1 // loop_footer_branch
      %17 = sbr.rel target = $region3
    $region8: #{tpu_custom_call.1} parent=1 // loop_exit
      _
    %435 = vsyncpa [#allocation3], 1
    %s436 = scalar_lea.sflag [#allocation3], 1
    %437 = vsyncpa %s436, 1
    %438 = vsyncpa [#allocation6], 1
    %s439 = scalar_lea.sflag [#allocation6], 1
    %440 = vsyncpa %s439, 1
    %441 = vsyncpa [#allocation4], 1
    %s442 = scalar_lea.sflag [#allocation4], 1
    %443 = vsyncpa %s442, 1

</llo_original>
